<compile_context>
chip_gen: v7x
topology: tpu7x:2x2x1
jax: 0.10.0
libtpu: 0.0.40
codegen_flags: <defaults>
</compile_context>

<pallas_src>
import functools

import numpy as np
import jax
import jax.numpy as jnp
from jax.experimental import pallas as pl
from jax.experimental.pallas import tpu as pltpu


def _round_up(n, m):
    return ((n + m - 1) // m) * m


def _dfm_kernel(hp1, ep, num_deep, idx_ref, m_ref, *rest):
    """Transposed (batch-on-lanes) DeepFM forward for one batch tile.

    idx_ref : (F, TB) int32   global vocab ids (field offsets already added)
    m_ref   : (C_pad, K_pad) bf16 fused first-stage matrix (transposed), rows:
                [0:hp1)        emb @ W1_folded  (+ b1/F folded in)
                [hp1:hp1+ep)   raw embedding rows (FM per-dim field sums)
                hp1+ep         fc + (linear_bias + final_bias)/F - 0.5*||emb||^2
    rest    : (W_T, b_col) per deeper MLP layer, wf_col, out_ref
    """
    layer_refs = rest[:2 * num_deep]
    wf_ref = rest[2 * num_deep]
    out_ref = rest[2 * num_deep + 1]

    num_fields, tb = idx_ref.shape
    k_pad = m_ref.shape[1]

    # Multi-hot over the padded vocab, batch on lanes (fields occupy disjoint id ranges).
    iota_v = jax.lax.broadcasted_iota(jnp.int32, (k_pad, tb), 0)
    mh = jnp.zeros((k_pad, tb), jnp.float32)
    for f in range(num_fields):
        row = idx_ref[f:f + 1, :]                              # (1, TB) int32
        mh = mh + jnp.where(iota_v == row, 1.0, 0.0)
    mh = mh.astype(jnp.bfloat16)

    # Single fused MXU pass: first MLP layer, FM field sums, and the scalar tail.
    z = jnp.dot(m_ref[...], mh, preferred_element_type=jnp.float32)   # (C_pad, TB) f32

    h = jnp.maximum(z[:hp1, :], 0.0)                           # ReLU(flat @ W1 + b1)
    g = z[hp1:hp1 + ep, :]                                     # sum_f emb[idx_f], per dim
    tail = z[hp1 + ep:hp1 + ep + 1, :]                         # lin + biases - 0.5*sum_sq

    fm = 0.5 * jnp.sum(g * g, axis=0, keepdims=True)           # (-0.5*sum_sq lives in tail)

    # Remaining MLP layers (BN folded; Dropout = identity in eval mode).
    for l in range(num_deep):
        w_ref, b_ref = layer_refs[2 * l], layer_refs[2 * l + 1]
        h = jnp.dot(w_ref[...], h.astype(jnp.bfloat16),
                    preferred_element_type=jnp.float32)
        h = jnp.maximum(h + b_ref[...], 0.0)

    mlp_out = jnp.sum(h * wf_ref[...], axis=0, keepdims=True)  # final (H -> 1) projection

    out_ref[...] = jax.nn.sigmoid(tail + fm + mlp_out)         # (1, TB) lane-dense store


def _choose_tiles(batch, block_b):
    """Lane-dense batch tile (multiple of 128) with a few grid steps."""
    if batch < 128:
        b_pad = _round_up(batch, 8)
        return b_pad, b_pad                                    # single full-array block
    tb = max(128, min(_round_up(block_b, 128), _round_up(pl.cdiv(batch, 4), 128)))
    return tb, _round_up(batch, tb)


def deepfm_forward(x, params, *, block_b=2048):
    """x: (B, F) int32 raw per-field indices. Returns (B,) float32 probabilities."""
    B, F = x.shape
    field_dims = params["field_dims"]
    assert len(field_dims) == F
    emb = params["embedding"]                                  # (vocab, E) f32
    fc = params["fc"][:, 0]                                    # (vocab,)
    vocab, E = emb.shape
    eps = 1e-5

    # ---- fold eval-mode BatchNorm into each Linear layer (glue, tiny) ----
    ws, bs = [], []
    for (w, b, gamma, beta, mean, var) in params["mlp_layers"]:
        scale = gamma * jax.lax.rsqrt(var + eps)
        ws.append(w * scale[None, :])
        bs.append((b - mean) * scale + beta)
    assert len(ws) >= 1, "at least one hidden MLP layer is required"
    h1 = ws[0].shape[1]
    hp1, ep = _round_up(h1, 8), _round_up(E, 8)
    k_pad = _round_up(vocab, 8)

    # ---- fused first-stage matrix: one row per (padded) vocab entry ----
    offsets_np = np.concatenate(([0], np.cumsum(field_dims)[:-1])).astype(np.int64)
    w1_rows = []
    for f in range(F):
        lo = int(offsets_np[f]); hi = lo + int(field_dims[f])
        w1_rows.append(emb[lo:hi] @ ws[0][f * E:(f + 1) * E, :])       # (dim_f, H1)
    w1_rows = jnp.concatenate(w1_rows, axis=0) + bs[0][None, :] / F    # (vocab, H1)
    bias_all = (params["linear_bias"][0] + params["mlp_final_b"][0]) / F
    tail_col = (fc + bias_all - 0.5 * jnp.sum(emb * emb, axis=1))[:, None]

    c_pad = _round_up(hp1 + ep + 1, 8)
    m = jnp.zeros((k_pad, c_pad), jnp.float32)
    m = m.at[:vocab, :h1].set(w1_rows)
    m = m.at[:vocab, hp1:hp1 + E].set(emb)
    m = m.at[:vocab, hp1 + ep:hp1 + ep + 1].set(tail_col)
    m_t = m.T.astype(jnp.bfloat16)                             # (C_pad, K_pad), resident

    # ---- deeper MLP layers: zero-pad dims to sublane multiples, transpose ----
    deep = []
    in_p = hp1
    for l in range(1, len(ws)):
        w, b = ws[l], bs[l]
        h_in, h_out = w.shape
        out_p = _round_up(h_out, 8)
        w_pad = jnp.zeros((in_p, out_p), jnp.float32).at[:h_in, :h_out].set(w)
        b_pad = jnp.zeros((out_p,), jnp.float32).at[:h_out].set(b)
        deep.append((w_pad.T.astype(jnp.bfloat16), b_pad[:, None]))
        in_p = out_p
    h_last = params["mlp_final_w"].shape[0]
    wf_col = jnp.zeros((in_p,), jnp.float32).at[:h_last].set(
        params["mlp_final_w"][:, 0])[:, None]                  # (Hp_last, 1) f32

    # ---- lane-dense batch tiling of the (tiny) transposed index input ----
    tb, b_pad = _choose_tiles(B, block_b)
    idx_t = x.T.astype(jnp.int32) + params["offsets"][:, None].astype(jnp.int32)
    if b_pad != B:
        idx_t = jnp.pad(idx_t, ((0, 0), (0, b_pad - B)))       # pad ids -> row 0 (discarded)
    grid = (b_pad // tb,)
    # TODO(synk): consuming idx in its native (B, F) layout (scalar prefetch or in-kernel
    # relayout) would remove this small glue transpose/pad copy (16 B/row).

    num_deep = len(deep)
    kernel = functools.partial(_dfm_kernel, hp1, ep, num_deep)

    def resident(a):                                           # whole array, stays in VMEM
        return pl.BlockSpec(a.shape, lambda i: (0, 0))

    inputs = [idx_t, m_t]
    in_specs = [pl.BlockSpec((F, tb), lambda i: (0, i)), resident(m_t)]
    for w_t, b_col in deep:
        inputs += [w_t, b_col]
        in_specs += [resident(w_t), resident(b_col)]
    inputs.append(wf_col)
    in_specs.append(resident(wf_col))

    out = pl.pallas_call(
        kernel,
        out_shape=jax.ShapeDtypeStruct((1, b_pad), jnp.float32),
        grid=grid,
        in_specs=in_specs,
        out_specs=pl.BlockSpec((1, tb), lambda i: (0, i)),
        compiler_params=pltpu.CompilerParams(
            dimension_semantics=("parallel",)),
    )(*inputs)
    return out[0, :B]                                          # torch.sigmoid(x.squeeze(1))


def init_params(key, field_dims, embed_dim, mlp_dims):
    """Deterministic synthetic parameters matching the torch module's shapes."""
    vocab = int(sum(field_dims))
    keys = jax.random.split(key, 3 + 2 * len(mlp_dims))
    ki = iter(keys)
    params = {}
    params["field_dims"] = tuple(int(d) for d in field_dims)
    params["offsets"] = jnp.asarray(
        np.concatenate(([0], np.cumsum(field_dims)[:-1])), dtype=jnp.int32)
    params["embedding"] = 0.1 * jax.random.normal(next(ki), (vocab, embed_dim), jnp.float32)
    params["fc"] = 0.1 * jax.random.normal(next(ki), (vocab, 1), jnp.float32)
    params["linear_bias"] = jnp.zeros((1,), jnp.float32)

    layers = []
    in_dim = len(field_dims) * embed_dim
    for h in mlp_dims:
        w = jax.random.normal(next(ki), (in_dim, h), jnp.float32) / np.sqrt(in_dim)
        b = 0.01 * jax.random.normal(next(ki), (h,), jnp.float32)
        gamma = jnp.ones((h,), jnp.float32)
        beta = jnp.zeros((h,), jnp.float32)
        running_mean = jnp.zeros((h,), jnp.float32)
        running_var = jnp.ones((h,), jnp.float32)
        layers.append((w, b, gamma, beta, running_mean, running_var))
        in_dim = h
    params["mlp_layers"] = layers
    params["mlp_final_w"] = jax.random.normal(next(ki), (in_dim, 1), jnp.float32) / np.sqrt(in_dim)
    params["mlp_final_b"] = jnp.zeros((1,), jnp.float32)
    return params


def deepfm_reference(x, params):
    """Pure-JAX f32 reference of the torch forward (eval mode), for validation."""
    eps = 1e-5
    idx = x + params["offsets"][None, :]
    emb = params["embedding"][idx]
    lin = jnp.sum(params["fc"][idx][..., 0], axis=1, keepdims=True) + params["linear_bias"]
    s = jnp.sum(emb, axis=1)
    fm = 0.5 * jnp.sum(s * s - jnp.sum(emb * emb, axis=1), axis=1, keepdims=True)
    h = emb.reshape(x.shape[0], -1)
    for (w, b, gamma, beta, mean, var) in params["mlp_layers"]:
        h = h @ w + b
        h = (h - mean) / jnp.sqrt(var + eps) * gamma + beta
        h = jnp.maximum(h, 0.0)
    mlp_out = h @ params["mlp_final_w"] + params["mlp_final_b"]
    return jax.nn.sigmoid((lin + fm + mlp_out)[:, 0])


if __name__ == "__main__":
    field_dims = (10, 7, 5, 3)     # 4 fields, vocab = 25
    embed_dim = 16
    mlp_dims = (32, 16)
    dropout = 0.2                  # identity in eval mode
    B = 300                        # -> lane-dense batch tiles of 128, grid of 3 (pad to 384)

    key = jax.random.PRNGKey(0)
    kx, kp = jax.random.split(key)
    cols = [
        jax.random.randint(jax.random.fold_in(kx, i), (B,), 0, fd, dtype=jnp.int32)
        for i, fd in enumerate(field_dims)
    ]
    x = jnp.stack(cols, axis=1)    # (B, F) int32

    params = init_params(kp, field_dims, embed_dim, mlp_dims)

    out = jax.block_until_ready(deepfm_forward(x, params))
    ref = deepfm_reference(x, params)

    assert out.shape == (B,)
    # bf16 MXU operands vs f32 reference -> loosened tolerance.
    np.testing.assert_allclose(np.asarray(out), np.asarray(ref), rtol=2e-2, atol=1e-2)
    print("KERNEL_OK")
</pallas_src>

<mosaic_0001>
module attributes {stable_mosaic.version = 11 : i64} {
  func.func @_dfm_kernel(%arg0: i32, %arg1: memref<4x128xi32, #tpu.memory_space<vmem>>, %arg2: memref<56x32xbf16, #tpu.memory_space<vmem>>, %arg3: memref<16x32xbf16, #tpu.memory_space<vmem>>, %arg4: memref<16x1xf32, #tpu.memory_space<vmem>>, %arg5: memref<16x1xf32, #tpu.memory_space<vmem>>, %arg6: memref<1x128xf32, #tpu.memory_space<vmem>>) attributes {dimension_semantics = [#tpu.dimension_semantics<parallel>], iteration_bounds = array<i64: 3>, scalar_prefetch = 0 : i64, scratch_operands = 0 : i64, tpu.core_type = #tpu.core_type<tc>, window_params = [{transform_indices = @transform_0, window_bounds = array<i64: 4, 128>}, {pipeline_mode = #tpu.pipeline_mode<synchronous>, transform_indices = @transform_1, window_bounds = array<i64: 56, 32>}, {pipeline_mode = #tpu.pipeline_mode<synchronous>, transform_indices = @transform_2, window_bounds = array<i64: 16, 32>}, {pipeline_mode = #tpu.pipeline_mode<synchronous>, transform_indices = @transform_3, window_bounds = array<i64: 16, 1>}, {pipeline_mode = #tpu.pipeline_mode<synchronous>, transform_indices = @transform_4, window_bounds = array<i64: 16, 1>}, {transform_indices = @transform_5, window_bounds = array<i64: 1, 128>}]} {
    %0 = tpu.iota {dimensions = array<i32: 0>} : vector<32x128xi32>
    %cst = arith.constant 0.000000e+00 : f32
    %1 = vector.broadcast %cst : f32 to vector<32x128xf32>
    %c0 = arith.constant 0 : index
    %c0_0 = arith.constant 0 : index
    %2 = vector.load %arg1[%c0, %c0_0] : memref<4x128xi32, #tpu.memory_space<vmem>>, vector<1x128xi32>
    %3 = vector.broadcast %2 : vector<1x128xi32> to vector<32x128xi32>
    %4 = arith.cmpi eq, %0, %3 : vector<32x128xi32>
    %cst_1 = arith.constant 1.000000e+00 : f32
    %cst_2 = arith.constant 0.000000e+00 : f32
    %5 = vector.broadcast %cst_1 : f32 to vector<32x128xf32>
    %6 = vector.broadcast %cst_2 : f32 to vector<32x128xf32>
    %7 = arith.select %4, %5, %6 : vector<32x128xi1>, vector<32x128xf32>
    %8 = arith.addf %1, %7 : vector<32x128xf32>
    %c1 = arith.constant 1 : index
    %c0_3 = arith.constant 0 : index
    %9 = vector.load %arg1[%c1, %c0_3] : memref<4x128xi32, #tpu.memory_space<vmem>>, vector<1x128xi32>
    %10 = vector.broadcast %9 : vector<1x128xi32> to vector<32x128xi32>
    %11 = arith.cmpi eq, %0, %10 : vector<32x128xi32>
    %cst_4 = arith.constant 1.000000e+00 : f32
    %cst_5 = arith.constant 0.000000e+00 : f32
    %12 = vector.broadcast %cst_4 : f32 to vector<32x128xf32>
    %13 = vector.broadcast %cst_5 : f32 to vector<32x128xf32>
    %14 = arith.select %11, %12, %13 : vector<32x128xi1>, vector<32x128xf32>
    %15 = arith.addf %8, %14 : vector<32x128xf32>
    %c2 = arith.constant 2 : index
    %c0_6 = arith.constant 0 : index
    %16 = vector.load %arg1[%c2, %c0_6] : memref<4x128xi32, #tpu.memory_space<vmem>>, vector<1x128xi32>
    %17 = vector.broadcast %16 : vector<1x128xi32> to vector<32x128xi32>
    %18 = arith.cmpi eq, %0, %17 : vector<32x128xi32>
    %cst_7 = arith.constant 1.000000e+00 : f32
    %cst_8 = arith.constant 0.000000e+00 : f32
    %19 = vector.broadcast %cst_7 : f32 to vector<32x128xf32>
    %20 = vector.broadcast %cst_8 : f32 to vector<32x128xf32>
    %21 = arith.select %18, %19, %20 : vector<32x128xi1>, vector<32x128xf32>
    %22 = arith.addf %15, %21 : vector<32x128xf32>
    %c3 = arith.constant 3 : index
    %c0_9 = arith.constant 0 : index
    %23 = vector.load %arg1[%c3, %c0_9] : memref<4x128xi32, #tpu.memory_space<vmem>>, vector<1x128xi32>
    %24 = vector.broadcast %23 : vector<1x128xi32> to vector<32x128xi32>
    %25 = arith.cmpi eq, %0, %24 : vector<32x128xi32>
    %cst_10 = arith.constant 1.000000e+00 : f32
    %cst_11 = arith.constant 0.000000e+00 : f32
    %26 = vector.broadcast %cst_10 : f32 to vector<32x128xf32>
    %27 = vector.broadcast %cst_11 : f32 to vector<32x128xf32>
    %28 = arith.select %25, %26, %27 : vector<32x128xi1>, vector<32x128xf32>
    %29 = arith.addf %22, %28 : vector<32x128xf32>
    %30 = arith.truncf %29 : vector<32x128xf32> to vector<32x128xbf16>
    %c0_12 = arith.constant 0 : index
    %c0_13 = arith.constant 0 : index
    %31 = vector.load %arg2[%c0_12, %c0_13] : memref<56x32xbf16, #tpu.memory_space<vmem>>, vector<56x32xbf16>
    %cst_14 = arith.constant dense<0.000000e+00> : vector<56x128xf32>
    %32 = tpu.matmul %31, %30, %cst_14 {dimension_numbers = #tpu.dot_dimension_numbers<[1], [0], [0], [1], [0, 0, 1, 1], [], []>} : vector<56x32xbf16>, vector<32x128xbf16>, vector<56x128xf32> -> vector<56x128xf32>
    %33 = vector.extract_strided_slice %32 {offsets = [0, 0], sizes = [32, 128], strides = [1, 1]} : vector<56x128xf32> to vector<32x128xf32>
    %cst_15 = arith.constant 0.000000e+00 : f32
    %34 = vector.broadcast %cst_15 : f32 to vector<32x128xf32>
    %35 = arith.maximumf %33, %34 : vector<32x128xf32>
    %36 = vector.extract_strided_slice %32 {offsets = [32, 0], sizes = [16, 128], strides = [1, 1]} : vector<56x128xf32> to vector<16x128xf32>
    %37 = vector.extract_strided_slice %32 {offsets = [48, 0], sizes = [1, 128], strides = [1, 1]} : vector<56x128xf32> to vector<1x128xf32>
    %38 = arith.mulf %36, %36 : vector<16x128xf32>
    %cst_16 = arith.constant dense<0.000000e+00> : vector<128xf32>
    %39 = vector.multi_reduction <add>, %38, %cst_16 [0] : vector<16x128xf32> to vector<128xf32>
    %40 = vector.shape_cast %39 : vector<128xf32> to vector<1x128xf32>
    %cst_17 = arith.constant 5.000000e-01 : f32
    %41 = vector.broadcast %cst_17 : f32 to vector<1x128xf32>
    %42 = arith.mulf %41, %40 : vector<1x128xf32>
    %c0_18 = arith.constant 0 : index
    %c0_19 = arith.constant 0 : index
    %43 = vector.load %arg3[%c0_18, %c0_19] : memref<16x32xbf16, #tpu.memory_space<vmem>>, vector<16x32xbf16>
    %44 = arith.truncf %35 : vector<32x128xf32> to vector<32x128xbf16>
    %cst_20 = arith.constant dense<0.000000e+00> : vector<16x128xf32>
    %45 = tpu.matmul %43, %44, %cst_20 {dimension_numbers = #tpu.dot_dimension_numbers<[1], [0], [0], [1], [0, 0, 1, 1], [], []>} : vector<16x32xbf16>, vector<32x128xbf16>, vector<16x128xf32> -> vector<16x128xf32>
    %c0_21 = arith.constant 0 : index
    %c0_22 = arith.constant 0 : index
    %46 = vector.load %arg4[%c0_21, %c0_22] : memref<16x1xf32, #tpu.memory_space<vmem>>, vector<16x1xf32>
    %47 = vector.broadcast %46 : vector<16x1xf32> to vector<16x128xf32>
    %48 = arith.addf %45, %47 : vector<16x128xf32>
    %cst_23 = arith.constant 0.000000e+00 : f32
    %49 = vector.broadcast %cst_23 : f32 to vector<16x128xf32>
    %50 = arith.maximumf %48, %49 : vector<16x128xf32>
    %c0_24 = arith.constant 0 : index
    %c0_25 = arith.constant 0 : index
    %51 = vector.load %arg5[%c0_24, %c0_25] : memref<16x1xf32, #tpu.memory_space<vmem>>, vector<16x1xf32>
    %52 = vector.broadcast %51 : vector<16x1xf32> to vector<16x128xf32>
    %53 = arith.mulf %50, %52 : vector<16x128xf32>
    %cst_26 = arith.constant dense<0.000000e+00> : vector<128xf32>
    %54 = vector.multi_reduction <add>, %53, %cst_26 [0] : vector<16x128xf32> to vector<128xf32>
    %55 = vector.shape_cast %54 : vector<128xf32> to vector<1x128xf32>
    %56 = arith.addf %37, %42 : vector<1x128xf32>
    %57 = arith.addf %56, %55 : vector<1x128xf32>
    %58 = arith.negf %57 : vector<1x128xf32>
    %59 = math.exp %58 : vector<1x128xf32>
    %cst_27 = arith.constant 1.000000e+00 : f32
    %60 = vector.broadcast %cst_27 : f32 to vector<1x128xf32>
    %61 = arith.addf %60, %59 : vector<1x128xf32>
    %62 = arith.divf %60, %61 : vector<1x128xf32>
    %c0_28 = arith.constant 0 : index
    %c0_29 = arith.constant 0 : index
    %63 = vector.load %arg6[%c0_28, %c0_29] : memref<1x128xf32, #tpu.memory_space<vmem>>, vector<1x128xf32>
    tpu.vector_store %arg6[%c0_28, %c0_29], %62 {strides = array<i32>} : memref<1x128xf32, #tpu.memory_space<vmem>>, vector<1x128xf32>,
    return
  }
  func.func @transform_0(%arg0: i32) -> (i32, i32) {
    %c0_i32 = arith.constant 0 : i32
    %c0_i32_0 = arith.constant 0 : i32
    return %c0_i32, %arg0 : i32, i32
  }
  func.func @transform_1(%arg0: i32) -> (i32, i32) {
    %c0_i32 = arith.constant 0 : i32
    %c0_i32_0 = arith.constant 0 : i32
    %c0_i32_1 = arith.constant 0 : i32
    return %c0_i32, %c0_i32_0 : i32, i32
  }
  func.func @transform_2(%arg0: i32) -> (i32, i32) {
    %c0_i32 = arith.constant 0 : i32
    %c0_i32_0 = arith.constant 0 : i32
    %c0_i32_1 = arith.constant 0 : i32
    return %c0_i32, %c0_i32_0 : i32, i32
  }
  func.func @transform_3(%arg0: i32) -> (i32, i32) {
    %c0_i32 = arith.constant 0 : i32
    %c0_i32_0 = arith.constant 0 : i32
    %c0_i32_1 = arith.constant 0 : i32
    return %c0_i32, %c0_i32_0 : i32, i32
  }
  func.func @transform_4(%arg0: i32) -> (i32, i32) {
    %c0_i32 = arith.constant 0 : i32
    %c0_i32_0 = arith.constant 0 : i32
    %c0_i32_1 = arith.constant 0 : i32
    return %c0_i32, %c0_i32_0 : i32, i32
  }
  func.func @transform_5(%arg0: i32) -> (i32, i32) {
    %c0_i32 = arith.constant 0 : i32
    %c0_i32_0 = arith.constant 0 : i32
    return %c0_i32, %arg0 : i32, i32
  }
}

</mosaic_0001>

<llo_original>
// kernel: tpu_custom_call.1
$region0: #{tpu_custom_call.1}
  #allocation0 [shape = 'u32[]', space=smem, size = 0x4, offset = 0x4, fixed_abs, tag = 'smem constant byte address 0x4 - core index']
  #allocation1 [shape = 'u32[144,128]{1,0:T(1,128)}', space=vmem, size = 0x12000, scoped, tag = 'internal scratch']
  %s0 = inlined_call_operand.vmem [shape: s32[4,384], index: 0, kind: input, shape index: {}]
  %s1 = inlined_call_operand.vmem [shape: bf16[56,32], index: 1, kind: input, shape index: {}]
  %s2 = inlined_call_operand.vmem [shape: bf16[16,32], index: 2, kind: input, shape index: {}]
  %s3 = inlined_call_operand.vmem [shape: f32[16,1], index: 3, kind: input, shape index: {}]
  %s4 = inlined_call_operand.vmem [shape: f32[16,1], index: 4, kind: input, shape index: {}]
  %s5 = inlined_call_operand.hbm [shape: f32[1,384], index: 5, kind: output, shape index: {}]
  %s6 = sld [smem:[#allocation0]]
  $region53: #{tpu_custom_call.1} parent=0
    _
  %s8 = ssub.s32 1, %s6
  %s9 = scalar_select 0, %s8, %s6
  $region1: #{tpu_custom_call.1} parent=0
    #allocation2 [shape = 'u8[1024]{0}', space=vmem, size = 0x400, scoped, tag = 'output window, operand 0']
    #allocation3 [shape = 's32[2]{0}', space=sflag, size = 0x8, scoped, tag = 'scoped memory for tpu_custom_call.1']
    %10 = vsyncpa [#allocation3], 0
    %s11 = scalar_lea.sflag [#allocation3], 1
    %12 = vsyncpa %s11, 0
    loop: start=0, step=1, limit=5
    $region2: #{tpu_custom_call.1} parent=1 // loop_pre_header
      _
    $region3: #{tpu_custom_call.1} parent=1 // loop_header
      %s14 = sphi 0, %s18
      %p15 = scmp.ge.s32.totalorder %s14, 5
      %s24 = sphi 0, %s26
      %s27 = sphi 0, %s24
      %s28 = sphi 0, %s27
      %s44 = sphi 0, %s28
      %s48 = sphi 0, %s48
      %s50 = sphi 0, %s48
      %s51 = sphi 0, %s50
      %s65 = sphi 0, %s51
      %s69 = sphi 0, %s69
      %s71 = sphi 0, %s69
      %s72 = sphi 0, %s71
      %s86 = sphi 0, %s72
      %s90 = sphi 0, %s90
      %s92 = sphi 0, %s90
      %s93 = sphi 0, %s92
      %s107 = sphi 0, %s93
      %s111 = sphi 0, %s111
      %s113 = sphi 0, %s111
      %s114 = sphi 0, %s113
      %s128 = sphi 0, %s114
      %s134 = sphi 0, %s136
      %s137 = sphi 0, %s134
      %s138 = sphi 0, %s137
      %s154 = sphi 0, %s138
    $region4: #{tpu_custom_call.1} parent=1 // loop_header_branch
      %17 = sbr.rel (%p15) target = $region8
    $region5: #{tpu_custom_call.1} parent=1 // loop_body
      %s19 = ssub.s32 %s14, 1
      %s20 = ssub.s32 %s14, 2
      %s21 = sadd.s32 %s14, 1
      %s22 = ssub.s32 %s14, %s21
      %p23 = scmp.eq.s32.totalorder %s22, 0
      %s25 = sadd.s32 %s24, 1
      %s26 = scalar_select %p23, %s24, %s25
      %p29 = pneg %p23
      %p30 = scmp.eq.s32.totalorder %s14, 2
      %p31 = por %p29, %p30
      %p32 = scmp.ne.s32.totalorder %s24, %s27
      %p33 = scmp.eq.s32.totalorder %s14, 0
      %p34 = por %p32, %p33
      %p35 = scmp.ne.s32.totalorder %s24, %s27
      %p36 = scmp.eq.s32.totalorder %s19, 2
      %p37 = por %p35, %p36
      %p38 = scmp.ne.s32.totalorder %s27, %s28
      %p39 = scmp.eq.s32.totalorder %s19, 0
      %p40 = por %p38, %p39
      %p41 = scmp.ne.s32.totalorder %s27, %s28
      %p42 = scmp.eq.s32.totalorder %s20, 2
      %p43 = por %p41, %p42
      %p45 = scmp.ne.s32.totalorder %s28, %s44
      %p46 = scmp.eq.s32.totalorder %s20, 0
      %p47 = por %p45, %p46
      %s49 = sadd.s32 %s48, 1
      %p52 = scmp.eq.s32.totalorder %s14, 2
      %p53 = scmp.ne.s32.totalorder %s48, %s50
      %p54 = scmp.eq.s32.totalorder %s14, 0
      %p55 = por %p53, %p54
      %p56 = scmp.ne.s32.totalorder %s48, %s50
      %p57 = scmp.eq.s32.totalorder %s19, 2
      %p58 = por %p56, %p57
      %p59 = scmp.ne.s32.totalorder %s50, %s51
      %p60 = scmp.eq.s32.totalorder %s19, 0
      %p61 = por %p59, %p60
      %p62 = scmp.ne.s32.totalorder %s50, %s51
      %p63 = scmp.eq.s32.totalorder %s20, 2
      %p64 = por %p62, %p63
      %p66 = scmp.ne.s32.totalorder %s51, %s65
      %p67 = scmp.eq.s32.totalorder %s20, 0
      %p68 = por %p66, %p67
      %s70 = sadd.s32 %s69, 1
      %p73 = scmp.eq.s32.totalorder %s14, 2
      %p74 = scmp.ne.s32.totalorder %s69, %s71
      %p75 = scmp.eq.s32.totalorder %s14, 0
      %p76 = por %p74, %p75
      %p77 = scmp.ne.s32.totalorder %s69, %s71
      %p78 = scmp.eq.s32.totalorder %s19, 2
      %p79 = por %p77, %p78
      %p80 = scmp.ne.s32.totalorder %s71, %s72
      %p81 = scmp.eq.s32.totalorder %s19, 0
      %p82 = por %p80, %p81
      %p83 = scmp.ne.s32.totalorder %s71, %s72
      %p84 = scmp.eq.s32.totalorder %s20, 2
      %p85 = por %p83, %p84
      %p87 = scmp.ne.s32.totalorder %s72, %s86
      %p88 = scmp.eq.s32.totalorder %s20, 0
      %p89 = por %p87, %p88
      %s91 = sadd.s32 %s90, 1
      %p94 = scmp.eq.s32.totalorder %s14, 2
      %p95 = scmp.ne.s32.totalorder %s90, %s92
      %p96 = scmp.eq.s32.totalorder %s14, 0
      %p97 = por %p95, %p96
      %p98 = scmp.ne.s32.totalorder %s90, %s92
      %p99 = scmp.eq.s32.totalorder %s19, 2
      %p100 = por %p98, %p99
      %p101 = scmp.ne.s32.totalorder %s92, %s93
      %p102 = scmp.eq.s32.totalorder %s19, 0
      %p103 = por %p101, %p102
      %p104 = scmp.ne.s32.totalorder %s92, %s93
      %p105 = scmp.eq.s32.totalorder %s20, 2
      %p106 = por %p104, %p105
      %p108 = scmp.ne.s32.totalorder %s93, %s107
      %p109 = scmp.eq.s32.totalorder %s20, 0
      %p110 = por %p108, %p109
      %s112 = sadd.s32 %s111, 1
      %p115 = scmp.eq.s32.totalorder %s14, 2
      %p116 = scmp.ne.s32.totalorder %s111, %s113
      %p117 = scmp.eq.s32.totalorder %s14, 0
      %p118 = por %p116, %p117
      %p119 = scmp.ne.s32.totalorder %s111, %s113
      %p120 = scmp.eq.s32.totalorder %s19, 2
      %p121 = por %p119, %p120
      %p122 = scmp.ne.s32.totalorder %s113, %s114
      %p123 = scmp.eq.s32.totalorder %s19, 0
      %p124 = por %p122, %p123
      %p125 = scmp.ne.s32.totalorder %s113, %s114
      %p126 = scmp.eq.s32.totalorder %s20, 2
      %p127 = por %p125, %p126
      %p129 = scmp.ne.s32.totalorder %s114, %s128
      %p130 = scmp.eq.s32.totalorder %s20, 0
      %p131 = por %p129, %p130
      %s132 = ssub.s32 %s14, %s21
      %p133 = scmp.eq.s32.totalorder %s132, 0
      %s135 = sadd.s32 %s134, 1
      %s136 = scalar_select %p133, %s134, %s135
      %p139 = pneg %p133
      %p140 = scmp.eq.s32.totalorder %s14, 2
      %p141 = por %p139, %p140
      %p142 = scmp.ne.s32.totalorder %s134, %s137
      %p143 = scmp.eq.s32.totalorder %s14, 0
      %p144 = por %p142, %p143
      %p145 = scmp.ne.s32.totalorder %s134, %s137
      %p146 = scmp.eq.s32.totalorder %s19, 2
      %p147 = por %p145, %p146
      %p148 = scmp.ne.s32.totalorder %s137, %s138
      %p149 = scmp.eq.s32.totalorder %s19, 0
      %p150 = por %p148, %p149
      %p151 = scmp.ne.s32.totalorder %s137, %s138
      %p152 = scmp.eq.s32.totalorder %s20, 2
      %p153 = por %p151, %p152
      %p155 = scmp.ne.s32.totalorder %s138, %s154
      %p156 = scmp.eq.s32.totalorder %s20, 0
      %p157 = por %p155, %p156
      %p158 = scmp.le.s32.totalorder 1, %s14
      %p159 = scmp.lt.s32.totalorder %s14, 4
      %p160 = pnand %p158, %p159
      %p161 = pneg %p160
      // Predicated region
      $region9: #{tpu_custom_call.1} parent=5 // pred_check
        _
      $region10: #{tpu_custom_call.1} parent=5 // pred_check_branch
        %163 = sbr.rel (%p160) target = $region12
      $region11: #{tpu_custom_call.1} parent=5 // pred_region
        %s164 = ssub.s32 %s14, 1
        // Predicated region
        $region13: #{tpu_custom_call.1} parent=11 // pred_check
          %p165 = pneg %p61
        $region14: #{tpu_custom_call.1} parent=11 // pred_check_branch
          %167 = sbr.rel (%p165) target = $region16
        $region15: #{tpu_custom_call.1} parent=11 // pred_region
          _
        $region16: #{tpu_custom_call.1} parent=11 // pred_fallthru
          _
        // Predicated region
        $region17: #{tpu_custom_call.1} parent=11 // pred_check
          %p168 = pneg %p82
        $region18: #{tpu_custom_call.1} parent=11 // pred_check_branch
          %170 = sbr.rel (%p168) target = $region20
        $region19: #{tpu_custom_call.1} parent=11 // pred_region
          _
        $region20: #{tpu_custom_call.1} parent=11 // pred_fallthru
          _
        // Predicated region
        $region21: #{tpu_custom_call.1} parent=11 // pred_check
          %p171 = pneg %p103
        $region22: #{tpu_custom_call.1} parent=11 // pred_check_branch
          %173 = sbr.rel (%p171) target = $region24
        $region23: #{tpu_custom_call.1} parent=11 // pred_region
          _
        $region24: #{tpu_custom_call.1} parent=11 // pred_fallthru
          _
        // Predicated region
        $region25: #{tpu_custom_call.1} parent=11 // pred_check
          %p174 = pneg %p124
        $region26: #{tpu_custom_call.1} parent=11 // pred_check_branch
          %176 = sbr.rel (%p174) target = $region28
        $region27: #{tpu_custom_call.1} parent=11 // pred_region
          _
        $region28: #{tpu_custom_call.1} parent=11 // pred_fallthru
          _
      $region12: #{tpu_custom_call.1} parent=5 // pred_fallthru
        _
      %p177 = scmp.lt.s32.totalorder %s14, 3
      // Predicated region
      $region29: #{tpu_custom_call.1} parent=5 // pred_check
        %p178 = pneg %p177
      $region30: #{tpu_custom_call.1} parent=5 // pred_check_branch
        %180 = sbr.rel (%p178) target = $region32
      $region31: #{tpu_custom_call.1} parent=5 // pred_region
        // Predicated region
        $region33: #{tpu_custom_call.1} parent=31 // pred_check
          %p181 = pneg %p34
        $region34: #{tpu_custom_call.1} parent=31 // pred_check_branch
          %183 = sbr.rel (%p181) target = $region36
        $region35: #{tpu_custom_call.1} parent=31 // pred_region
          %p184 = scmp.lt.s32.totalorder %s14, 2
          %s185 = scalar_select %p184, %s14, 2
          %s186 = smul.addr %s185, 4
          %s187 = scalar_lea.vmem %s0, %s186
        $region36: #{tpu_custom_call.1} parent=31 // pred_fallthru
          _
      $region32: #{tpu_custom_call.1} parent=5 // pred_fallthru
        _
      %p188 = scmp.le.s32.totalorder 1, %s14
      %p189 = scmp.lt.s32.totalorder %s14, 4
      %p190 = pnand %p188, %p189
      %p191 = pneg %p190
      // Predicated region
      $region37: #{tpu_custom_call.1} parent=5 // pred_check
        _
      $region38: #{tpu_custom_call.1} parent=5 // pred_check_branch
        %193 = sbr.rel (%p190) target = $region40
      $region39: #{tpu_custom_call.1} parent=5 // pred_region
        %s194 = ssub.s32 %s14, 1
        %p195 = scmp.lt.s32.totalorder %s19, 2
        %s196 = scalar_select %p195, %s19, 2
        %s197 = smul.addr %s196, 4
        %s198 = scalar_lea.vmem %s0, %s197
        %p199 = pneg %p40
        %p200 = pneg %p37
        %p201 = pneg %p61
        %p202 = pneg %p58
        %p203 = pneg %p82
        %p204 = pneg %p79
        %p205 = pneg %p103
        %p206 = pneg %p100
        %p207 = pneg %p124
        %p208 = pneg %p121
        %p209 = pneg %p150
        %p210 = pneg %p147
        %s211 = sand.u32 %s137, 1
        %s212 = scalar_lea.sflag [#allocation3], %s211
        %s213 = sand.u32 %s137, 1
        %s214 = scalar_lea.vmem [#allocation2], %s213
        %p215 = scmp.lt.s32.totalorder %s19, 2
        %s216 = scalar_select %p215, %s19, 2
        %s217 = smul.addr %s216, 4
        %s218 = scalar_lea.vmem %s0, %s217
        %v220 = vlaneseq
        %v221 = vshrl.u32 %v220, 7
        %v222 = vadd.s32 %v221, 8
        %v223 = vadd.s32 %v221, 16
        %v224 = vadd.s32 %v221, 24
        %v225 = vld [vmem:[%s218] sm:$0x1]
        %v226 = vlaneseq
        %v227 = vshrl.u32 %v226, 7
        %v228 = vsub.s32 0, %v227
        %v229 = vrot.slane %v225, %v228
        %vm230 = vcmp.eq.s32.totalorder %v221, %v229
        %vm231 = vcmp.eq.s32.totalorder %v222, %v229
        %vm232 = vcmp.eq.s32.totalorder %v223, %v229
        %vm233 = vcmp.eq.s32.totalorder %v224, %v229
        %v234 = vsel %vm230, 1.0, 0.0
        %v235 = vsel %vm231, 1.0, 0.0
        %v236 = vsel %vm232, 1.0, 0.0
        %v237 = vsel %vm233, 1.0, 0.0
        %v238 = vadd.f32 %v234, 0.0
        %v239 = vadd.f32 %v235, 0.0
        %v240 = vadd.f32 %v236, 0.0
        %v241 = vadd.f32 %v237, 0.0
        %v242 = vld [vmem:[%s218 + $0x1] sm:$0x1]
        %v243 = vlaneseq
        %v244 = vshrl.u32 %v243, 7
        %v245 = vsub.s32 0, %v244
        %v246 = vrot.slane %v242, %v245
        %vm247 = vcmp.eq.s32.totalorder %v221, %v246
        %vm248 = vcmp.eq.s32.totalorder %v222, %v246
        %vm249 = vcmp.eq.s32.totalorder %v223, %v246
        %vm250 = vcmp.eq.s32.totalorder %v224, %v246
        %v251 = vsel %vm247, 1.0, 0.0
        %v252 = vsel %vm248, 1.0, 0.0
        %v253 = vsel %vm249, 1.0, 0.0
        %v254 = vsel %vm250, 1.0, 0.0
        %v255 = vadd.f32 %v238, %v251
        %v256 = vadd.f32 %v239, %v252
        %v257 = vadd.f32 %v240, %v253
        %v258 = vadd.f32 %v241, %v254
        %v259 = vld [vmem:[%s218 + $0x2] sm:$0x1]
        %v260 = vlaneseq
        %v261 = vshrl.u32 %v260, 7
        %v262 = vsub.s32 0, %v261
        %v263 = vrot.slane %v259, %v262
        %vm264 = vcmp.eq.s32.totalorder %v221, %v263
        %vm265 = vcmp.eq.s32.totalorder %v222, %v263
        %vm266 = vcmp.eq.s32.totalorder %v223, %v263
        %vm267 = vcmp.eq.s32.totalorder %v224, %v263
        %v268 = vsel %vm264, 1.0, 0.0
        %v269 = vsel %vm265, 1.0, 0.0
        %v270 = vsel %vm266, 1.0, 0.0
        %v271 = vsel %vm267, 1.0, 0.0
        %v272 = vadd.f32 %v255, %v268
        %v273 = vadd.f32 %v256, %v269
        %v274 = vadd.f32 %v257, %v270
        %v275 = vadd.f32 %v258, %v271
        %v276 = vld [vmem:[%s218 + $0x3] sm:$0x1]
        %v277 = vlaneseq
        %v278 = vshrl.u32 %v277, 7
        %v279 = vsub.s32 0, %v278
        %v280 = vrot.slane %v276, %v279
        %vm281 = vcmp.eq.s32.totalorder %v221, %v280
        %vm282 = vcmp.eq.s32.totalorder %v222, %v280
        %vm283 = vcmp.eq.s32.totalorder %v223, %v280
        %vm284 = vcmp.eq.s32.totalorder %v224, %v280
        %v285 = vsel %vm281, 1.0, 0.0
        %v286 = vsel %vm282, 1.0, 0.0
        %v287 = vsel %vm283, 1.0, 0.0
        %v288 = vsel %vm284, 1.0, 0.0
        %v289 = vadd.f32 %v272, %v285
        %v290 = vadd.f32 %v273, %v286
        %v291 = vadd.f32 %v274, %v287
        %v292 = vadd.f32 %v275, %v288
        %v293 = vpack.c.bf16 %v290, %v289
        %v294 = vpack.c.bf16 %v292, %v291
        %v295 = vld [vmem:[%s1] sm:$0xf]
        %v296 = vld [vmem:[%s1 + $0x4] sm:$0xf]
        %v297 = vld [vmem:[%s1 + $0x8] sm:$0xf]
        %v298 = vld [vmem:[%s1 + $0xc] sm:$0xf]
        %v299 = vld [vmem:[%s1 + $0x10] sm:$0xf]
        %v300 = vld [vmem:[%s1 + $0x14] sm:$0xf]
        %v301 = vld [vmem:[%s1 + $0x18] sm:$0xf]
        %v309 = vunpack.c.l.b16 %v295
        %v310 = vunpack.c.l.b16 %v296
        %v311 = vunpack.c.l.b16 %v297
        %v312 = vunpack.c.l.b16 %v298
        %v313 = vunpack.c.l.b16 %v299
        %v314 = vunpack.c.l.b16 %v300
        %v315 = vunpack.c.l.b16 %v301
        %v316 = vpack.c.b16 %v310, %v309
        %v317 = vpack.c.b16 %v312, %v311
        %v318 = vpack.c.b16 %v314, %v313
        %v319 = vpack.c.b16 %v315, %v315
        %vm320 = vcmask 261120
        %v322 = vsel %vm320, %v316, 0
        %v325 = vsel %vm320, %v317, 0
        %v328 = vsel %vm320, %v318, 0
        %v331 = vsel %vm320, %v319, 0
        %333 = vmatprep.subr.bf16.mxu0 0
        %334 = vmatpush1.bf16.msra.mxu0 %v293
        %335 = vmatprep.subr.bf16.mxu0 0
        %336 = vmatpush1.bf16.msra.mxu0 %v294
        %337 = vmatprep.subr.bf16.mxu0 0
        %338 = vmatpush1.bf16.msra.mxu0 0
        %339 = vmatprep.subr.bf16.mxu0 0
        %340 = vmatpush1.bf16.msra.mxu0 0
        %341 = vmatprep.subr.bf16.mxu0 0
        %342 = vmatpush1.bf16.msra.mxu0 0
        %343 = vmatprep.subr.bf16.mxu0 0
        %344 = vmatpush1.bf16.msra.mxu0 0
        %345 = vmatprep.subr.bf16.mxu0 0
        %346 = vmatpush1.bf16.msra.mxu0 0
        %347 = vmatprep.subr.bf16.mxu0 0
        %348 = vmatpush1.bf16.msra.mxu0 0
        %349 = vmatprep.subr.bf16.mxu0 0
        %350 = vmatpush1.bf16.msra.mxu0 0
        %351 = vmatprep.subr.bf16.mxu0 0
        %352 = vmatpush1.bf16.msra.mxu0 0
        %353 = vmatprep.subr.bf16.mxu0 0
        %354 = vmatpush1.bf16.msra.mxu0 0
        %355 = vmatprep.subr.bf16.mxu0 0
        %356 = vmatpush1.bf16.msra.mxu0 0
        %357 = vmatprep.subr.bf16.mxu0 0
        %358 = vmatpush1.bf16.msra.mxu0 0
        %359 = vmatprep.subr.bf16.mxu0 0
        %360 = vmatpush1.bf16.msra.mxu0 0
        %361 = vmatprep.subr.bf16.mxu0 0
        %362 = vmatpush1.bf16.msra.mxu0 0
        %363 = vmatprep.subr.bf16.mxu0 0
        %364 = vmatpush1.bf16.msra.mxu0 0
        %365 = vmatprep.mubr.bf16.mxu0 0
        %366 = vmatmul.mubr.bf16.gmra.mrb[0].mxu0 %v322
        %v367 = vpop.f32.mrb[0].mxu0
        %v368 = vadd.f32 0.0, %v367
        %v369 = vpop.f32.mrb[0].mxu0
        %v370 = vpop.f32.mrb[0].mxu0
        %v371 = vadd.f32 0.0, %v370
        %v372 = vpop.f32.mrb[0].mxu0
        %373 = vmatprep.mubr.bf16.mxu0 0
        %374 = vmatmul.mubr.bf16.gmra.mrb[0].mxu0 %v325
        %v375 = vpop.f32.mrb[0].mxu0
        %v376 = vadd.f32 0.0, %v375
        %v377 = vpop.f32.mrb[0].mxu0
        %v378 = vpop.f32.mrb[0].mxu0
        %v379 = vadd.f32 0.0, %v378
        %v380 = vpop.f32.mrb[0].mxu0
        %381 = vmatprep.mubr.bf16.mxu0 0
        %382 = vmatmul.mubr.bf16.gmra.mrb[0].mxu0 %v328
        %v383 = vpop.f32.mrb[0].mxu0
        %v384 = vadd.f32 0.0, %v383
        %v385 = vpop.f32.mrb[0].mxu0
        %v386 = vpop.f32.mrb[0].mxu0
        %v387 = vadd.f32 0.0, %v386
        %v388 = vpop.f32.mrb[0].mxu0
        %389 = vmatprep.mubr.bf16.mxu0 0
        %390 = vmatmul.mubr.bf16.gmra.mrb[0].mxu0 %v331
        %v391 = vpop.f32.mrb[0].mxu0
        %v392 = vadd.f32 0.0, %v391
        %v393 = vpop.f32.mrb[0].mxu0
        %v394 = vpop.f32.mrb[0].mxu0
        %v395 = vpop.f32.mrb[0].mxu0
        %396 = vdwg.mxu0
        %v397 = vmax.f32 %v368, 0.0
        %v398 = vmax.f32 %v371, 0.0
        %v399 = vmax.f32 %v376, 0.0
        %v400 = vmax.f32 %v379, 0.0
        %v401 = vmul.f32 %v384, %v384
        %v402 = vmul.f32 %v387, %v387
        %v403 = vadd.f32 %v401, %v402
        %v404 = vrot.slane %v403, 4
        %v405 = vadd.f32 %v403, %v404
        %v406 = vrot.slane %v405, 2
        %v407 = vadd.f32 %v405, %v406
        %v408 = vrot.slane %v407, 1
        %v409 = vadd.f32 %v407, %v408
        %v410 = vmul.f32 %v409, 0.5
        %v411 = vld [vmem:[%s2] sm:$0xf]
        %v412 = vld [vmem:[%s2 + $0x4] sm:$0xf]
        %v413 = vpack.c.bf16 %v398, %v397
        %v414 = vpack.c.bf16 %v400, %v399
        %v415 = vld [vmem:[%s3] sm:$0xff]
        %v416 = vld [vmem:[%s3 + $0x8] sm:$0xff]
        %418 = vset.pattern.permute.xlu0 0
        %419 = vperm.xlu0 %418, %v415
        %v420 = vpop.permute.xlu0 %419
        %423 = vset.pattern.permute.xlu0 0
        %424 = vperm.xlu0 %423, %v416
        %v425 = vpop.permute.xlu0 %424
        %v429 = vunpack.c.l.b16 %v411
        %v430 = vunpack.c.l.b16 %v412
        %v431 = vpack.c.b16 %v430, %v429
        %v433 = vsel %vm320, %v431, 0
        %435 = vmatprep.subr.bf16.mxu0 0
        %436 = vmatpush1.bf16.msra.mxu0 %v413
        %437 = vmatprep.subr.bf16.mxu0 0
        %438 = vmatpush1.bf16.msra.mxu0 %v414
        %439 = vmatprep.subr.bf16.mxu0 0
        %440 = vmatpush1.bf16.msra.mxu0 0
        %441 = vmatprep.subr.bf16.mxu0 0
        %442 = vmatpush1.bf16.msra.mxu0 0
        %443 = vmatprep.subr.bf16.mxu0 0
        %444 = vmatpush1.bf16.msra.mxu0 0
        %445 = vmatprep.subr.bf16.mxu0 0
        %446 = vmatpush1.bf16.msra.mxu0 0
        %447 = vmatprep.subr.bf16.mxu0 0
        %448 = vmatpush1.bf16.msra.mxu0 0
        %449 = vmatprep.subr.bf16.mxu0 0
        %450 = vmatpush1.bf16.msra.mxu0 0
        %451 = vmatprep.subr.bf16.mxu0 0
        %452 = vmatpush1.bf16.msra.mxu0 0
        %453 = vmatprep.subr.bf16.mxu0 0
        %454 = vmatpush1.bf16.msra.mxu0 0
        %455 = vmatprep.subr.bf16.mxu0 0
        %456 = vmatpush1.bf16.msra.mxu0 0
        %457 = vmatprep.subr.bf16.mxu0 0
        %458 = vmatpush1.bf16.msra.mxu0 0
        %459 = vmatprep.subr.bf16.mxu0 0
        %460 = vmatpush1.bf16.msra.mxu0 0
        %461 = vmatprep.subr.bf16.mxu0 0
        %462 = vmatpush1.bf16.msra.mxu0 0
        %463 = vmatprep.subr.bf16.mxu0 0
        %464 = vmatpush1.bf16.msra.mxu0 0
        %465 = vmatprep.subr.bf16.mxu0 0
        %466 = vmatpush1.bf16.msra.mxu0 0
        %467 = vmatprep.mubr.bf16.mxu0 0
        %468 = vmatmul.mubr.bf16.gmra.mrb[0].mxu0 %v433
        %v469 = vpop.f32.mrb[0].mxu0
        %v470 = vadd.f32 %v420, %v469
        %v471 = vpop.f32.mrb[0].mxu0
        %v472 = vpop.f32.mrb[0].mxu0
        %v473 = vadd.f32 %v425, %v472
        %v474 = vpop.f32.mrb[0].mxu0
        %475 = vdwg.mxu0
        %v476 = vmax.f32 %v470, 0.0
        %v477 = vmax.f32 %v473, 0.0
        %v478 = vld [vmem:[%s4] sm:$0xff]
        %v479 = vld [vmem:[%s4 + $0x8] sm:$0xff]
        %481 = vset.pattern.permute.xlu0 0
        %482 = vperm.xlu0 %481, %v478
        %v483 = vpop.permute.xlu0 %482
        %486 = vset.pattern.permute.xlu0 0
        %487 = vperm.xlu0 %486, %v479
        %v488 = vpop.permute.xlu0 %487
        %v490 = vmul.f32 %v476, %v483
        %v491 = vmul.f32 %v477, %v488
        %v492 = vadd.f32 %v490, %v491
        %v493 = vrot.slane %v492, 4
        %v494 = vadd.f32 %v492, %v493
        %v495 = vrot.slane %v494, 2
        %v496 = vadd.f32 %v494, %v495
        %v497 = vrot.slane %v496, 1
        %v498 = vadd.f32 %v496, %v497
        %v499 = vadd.f32 %v392, %v410
        %v500 = vadd.f32 %v499, %v498
        %v501 = vxor.u32 %v500, 2147483648
        %v502 = vmul.f32 %v501, 1.442695
        %v503 = vpow.pop %v502
        %v504 = vadd.f32 %v503, 1.0
        %v505 = vrcp.pop %v504
        %v506 = vmul.f32 1.0, %v505
        %507 = vst [vmem:[%s214] sm:$0x1] %v506
        %s508 = sand.u32 %s137, 1
        %s509 = scalar_lea.sflag [#allocation3], %s508
        %s510 = sand.u32 %s137, 1
        %s511 = scalar_lea.vmem [#allocation2], %s510
        // Predicated region
        $region41: #{tpu_custom_call.1} parent=39 // pred_check
          %p512 = pneg %p147
        $region42: #{tpu_custom_call.1} parent=39 // pred_check_branch
          %514 = sbr.rel (%p512) target = $region44
        $region43: #{tpu_custom_call.1} parent=39 // pred_region
          %s516 = ssub.s32 16, 16
          %517 = vsyncadd %s509, %s516
          %s518 = smul.addr %s19, 16
          %s519 = scalar_lea.hbm %s5, %s518
          %s521 = sshll.u32 %s511, 4
          %s522 = int_to_ptr.vmem [resolvable:$true] %s521
          %524 = dma.vmem_to_hbm [thread:$0]  %s522, 16, %s519, %s509
        $region44: #{tpu_custom_call.1} parent=39 // pred_fallthru
          _
      $region40: #{tpu_custom_call.1} parent=5 // pred_fallthru
        _
      %p525 = scmp.le.s32.totalorder 2, %s14
      // Predicated region
      $region45: #{tpu_custom_call.1} parent=5 // pred_check
        %p526 = pneg %p525
      $region46: #{tpu_custom_call.1} parent=5 // pred_check_branch
        %528 = sbr.rel (%p526) target = $region48
      $region47: #{tpu_custom_call.1} parent=5 // pred_region
        %s529 = ssub.s32 %s14, 2
        // Predicated region
        $region49: #{tpu_custom_call.1} parent=47 // pred_check
          %p530 = pneg %p153
        $region50: #{tpu_custom_call.1} parent=47 // pred_check_branch
          %532 = sbr.rel (%p530) target = $region52
        $region51: #{tpu_custom_call.1} parent=47 // pred_region
          %s533 = sand.u32 %s138, 1
          %s534 = scalar_lea.sflag [#allocation3], %s533
          %s535 = sand.u32 %s138, 1
          %s536 = scalar_lea.vmem [#allocation2], %s535
          %537 = dma.done %s534, 16
        $region52: #{tpu_custom_call.1} parent=47 // pred_fallthru
          _
      $region48: #{tpu_custom_call.1} parent=5 // pred_fallthru
        _
    $region6: #{tpu_custom_call.1} parent=1 // loop_footer
      %s18 = sadd.s32 1, %s14
    $region7: #{tpu_custom_call.1} parent=1 // loop_footer_branch
      %13 = sbr.rel target = $region3
    $region8: #{tpu_custom_call.1} parent=1 // loop_exit
      _
    %538 = vsyncpa [#allocation3], 1
    %s539 = scalar_lea.sflag [#allocation3], 1
    %540 = vsyncpa %s539, 1

</llo_original>
